<compile_context>
chip_gen: v7x
topology: tpu7x:2x2x1
jax: 0.10.0
libtpu: 0.0.40
codegen_flags: <defaults>
</compile_context>

<pallas_src>
import math

import jax
import jax.numpy as jnp
from jax import lax
from jax.experimental import pallas as pl
from jax.experimental.pallas import tpu as pltpu


def _pick_q_tile(L: int) -> int:
    """Largest q-tile <=256 that divides L and is a multiple of 8 (else full L)."""
    if L % 8 == 0:
        for t in (256, 128, 64, 32, 16, 8):
            if t <= L and L % t == 0:
                return t
    return L


def _pick_kv_tile(L: int) -> int:
    """Largest kv-tile <=512 that divides L and is a multiple of 128 (else full L)."""
    for t in (512, 256, 128):
        if t <= L and L % t == 0:
            return t
    return L


def _make_sdpa_kernel(scale: float, with_dropout: bool):
    def kernel(*refs):
        if with_dropout:
            (q_ref, k_ref, v_ref, mask_ref, keep_ref,
             o_ref, m_scr, l_scr, acc_scr) = refs
        else:
            (q_ref, k_ref, v_ref, mask_ref,
             o_ref, m_scr, l_scr, acc_scr) = refs
            keep_ref = None

        kv_idx = pl.program_id(2)

        @pl.when(kv_idx == 0)
        def _init():
            m_scr[...] = jnp.full_like(m_scr, -jnp.inf)
            l_scr[...] = jnp.zeros_like(l_scr)
            acc_scr[...] = jnp.zeros_like(acc_scr)

        q = q_ref[0]          # (tq, d_k)
        k = k_ref[0]          # (tk, d_k)
        v = v_ref[0]          # (tk, d_v)

        # scores = Q K^T / sqrt(d_k)   (MXU, f32 accumulation)
        s = lax.dot_general(q, k, (((1,), (1,)), ((), ())),
                            preferred_element_type=jnp.float32) * scale
        # masked_fill_(attn_mask, -1e9)
        s = jnp.where(mask_ref[0] != 0, -1000000000.0, s)

        # Online softmax across the kv grid axis.
        m_prev = m_scr[...]                                   # (tq, 1)
        m_new = jnp.maximum(m_prev, jnp.max(s, axis=-1, keepdims=True))
        alpha = jnp.exp(m_prev - m_new)
        p = jnp.exp(s - m_new)                                # (tq, tk)

        l_scr[...] = alpha * l_scr[...] + jnp.sum(p, axis=-1, keepdims=True)

        # Dropout acts on the *normalized* probs; since the normalizer l is
        # unchanged by dropout, applying keep/(1-p) to the unnormalized p
        # inside the accumulation is exact.
        pv = p if keep_ref is None else p * keep_ref[0]
        acc_scr[...] = alpha * acc_scr[...] + jnp.dot(
            pv.astype(v.dtype), v, preferred_element_type=jnp.float32)
        m_scr[...] = m_new

        @pl.when(kv_idx == pl.num_programs(2) - 1)
        def _finalize():
            o_ref[0] = (acc_scr[...] / l_scr[...]).astype(o_ref.dtype)

    return kernel


def scaled_dot_product_attention(Q, K, V, attn_mask, *,
                                 dropout_p: float = 0.0,
                                 dropout_rng=None):
    """Q: (..., Lq, d_k)  K: (..., Lk, d_k)  V: (..., Lk, d_v)
       attn_mask: broadcastable to (..., Lq, Lk), True/nonzero = masked out."""
    Q = jnp.asarray(Q)
    K = jnp.asarray(K)
    V = jnp.asarray(V)
    *bq, Lq, Dk = Q.shape
    *bk, Lk, Dk2 = K.shape
    *bv, Lkv, Dv = V.shape
    assert Dk == Dk2 and Lk == Lkv and tuple(bq) == tuple(bk) == tuple(bv)
    batch_shape = tuple(bq)
    B = math.prod(batch_shape) if batch_shape else 1

    q = Q.reshape(B, Lq, Dk)
    k = K.reshape(B, Lk, Dk)
    v = V.reshape(B, Lk, Dv)
    mask = jnp.broadcast_to(jnp.asarray(attn_mask), batch_shape + (Lq, Lk))
    mask = mask.reshape(B, Lq, Lk).astype(jnp.int32)

    use_dropout = (dropout_p > 0.0) and (dropout_rng is not None)
    if use_dropout:
        keep = jax.random.bernoulli(dropout_rng, 1.0 - dropout_p,
                                    batch_shape + (Lq, Lk))
        keep_scale = (keep.astype(jnp.float32) / (1.0 - dropout_p)
                      ).reshape(B, Lq, Lk)

    tq = _pick_q_tile(Lq)
    tk = _pick_kv_tile(Lk)
    grid = (B, Lq // tq, Lk // tk)
    scale = 1.0 / math.sqrt(Dk)

    in_specs = [
        pl.BlockSpec((1, tq, Dk), lambda b, qi, ki: (b, qi, 0)),   # Q tile
        pl.BlockSpec((1, tk, Dk), lambda b, qi, ki: (b, ki, 0)),   # K tile
        pl.BlockSpec((1, tk, Dv), lambda b, qi, ki: (b, ki, 0)),   # V tile
        pl.BlockSpec((1, tq, tk), lambda b, qi, ki: (b, qi, ki)),  # attn_mask tile
    ]
    inputs = [q, k, v, mask]
    if use_dropout:
        in_specs.append(pl.BlockSpec((1, tq, tk), lambda b, qi, ki: (b, qi, ki)))
        inputs.append(keep_scale)

    out = pl.pallas_call(
        _make_sdpa_kernel(scale, use_dropout),
        out_shape=jax.ShapeDtypeStruct((B, Lq, Dv), Q.dtype),
        grid=grid,
        in_specs=in_specs,
        out_specs=pl.BlockSpec((1, tq, Dv), lambda b, qi, ki: (b, qi, 0)),
        scratch_shapes=[
            pltpu.VMEM((tq, 1), jnp.float32),    # running row max  m
            pltpu.VMEM((tq, 1), jnp.float32),    # running denom    l
            pltpu.VMEM((tq, Dv), jnp.float32),   # output accumulator
        ],
        compiler_params=pltpu.CompilerParams(
            dimension_semantics=("parallel", "parallel", "arbitrary")),
    )(*inputs)

    return out.reshape(batch_shape + (Lq, Dv))


if __name__ == "__main__":
    # Small shapes consistent with the module: batch=2, heads=4, seq=8, d_k=d_v=32.
    batch, heads, L, d_k, d_v = 2, 4, 8, 32, 32

    key = jax.random.PRNGKey(0)
    kq, kk, kv_key = jax.random.split(key, 3)
    Q = jax.random.normal(kq, (batch, heads, L, d_k), dtype=jnp.float32)
    K = jax.random.normal(kk, (batch, heads, L, d_k), dtype=jnp.float32)
    V = jax.random.normal(kv_key, (batch, heads, L, d_v), dtype=jnp.float32)
    # Causal mask: True (=1) means "masked out", matching masked_fill_ semantics.
    causal = jnp.triu(jnp.ones((L, L), dtype=bool), k=1)
    attn_mask = jnp.broadcast_to(causal, (batch, heads, L, L))

    # --- eval mode (dropout=0.0, the module default) ---
    out = scaled_dot_product_attention(Q, K, V, attn_mask)
    out = jax.block_until_ready(out)

    # Pure-JAX reference mirroring the PyTorch forward.
    scores = jnp.einsum("bhqd,bhkd->bhqk", Q, K,
                        precision="highest") / math.sqrt(d_k)
    scores = jnp.where(attn_mask, -1000000000.0, scores)
    attn = jax.nn.softmax(scores, axis=-1)
    ref = jnp.einsum("bhqk,bhkd->bhqd", attn, V, precision="highest")

    assert out.shape == ref.shape and out.dtype == jnp.float32
    assert jnp.allclose(out, ref, atol=5e-4, rtol=5e-4), "mismatch vs reference (eval)"

    # --- training mode with dropout p=0.1 (mask generated from an explicit key) ---
    drop_key = jax.random.PRNGKey(42)
    out_d = scaled_dot_product_attention(Q, K, V, attn_mask,
                                         dropout_p=0.1, dropout_rng=drop_key)
    out_d = jax.block_until_ready(out_d)

    keep = jax.random.bernoulli(drop_key, 0.9, (batch, heads, L, L)
                                ).astype(jnp.float32) / 0.9
    ref_d = jnp.einsum("bhqk,bhkd->bhqd", attn * keep, V, precision="highest")
    assert out_d.shape == ref_d.shape
    assert jnp.allclose(out_d, ref_d, atol=5e-4, rtol=5e-4), "mismatch vs reference (dropout)"

    print("KERNEL_OK")
</pallas_src>

<mosaic_0001>
module attributes {stable_mosaic.version = 11 : i64} {
  func.func @kernel(%arg0: i32, %arg1: i32, %arg2: i32, %arg3: memref<1x8x32xf32, #tpu.memory_space<vmem>>, %arg4: memref<1x8x32xf32, #tpu.memory_space<vmem>>, %arg5: memref<1x8x32xf32, #tpu.memory_space<vmem>>, %arg6: memref<1x8x8xi32, #tpu.memory_space<vmem>>, %arg7: memref<1x8x32xf32, #tpu.memory_space<vmem>>, %arg8: memref<8x1xf32, #tpu.memory_space<vmem>>, %arg9: memref<8x1xf32, #tpu.memory_space<vmem>>, %arg10: memref<8x32xf32, #tpu.memory_space<vmem>>) attributes {dimension_semantics = [#tpu.dimension_semantics<parallel>, #tpu.dimension_semantics<parallel>, #tpu.dimension_semantics<arbitrary>], iteration_bounds = array<i64: 8, 1, 1>, scalar_prefetch = 0 : i64, scratch_operands = 3 : i64, tpu.core_type = #tpu.core_type<tc>, window_params = [{transform_indices = @transform_0, window_bounds = array<i64: 1, 8, 32>}, {transform_indices = @transform_1, window_bounds = array<i64: 1, 8, 32>}, {transform_indices = @transform_2, window_bounds = array<i64: 1, 8, 32>}, {transform_indices = @transform_3, window_bounds = array<i64: 1, 8, 8>}, {transform_indices = @transform_4, window_bounds = array<i64: 1, 8, 32>}]} {
    %c0_i32 = arith.constant 0 : i32
    %0 = arith.cmpi eq, %arg2, %c0_i32 : i32
    %1 = arith.extui %0 : i1 to i32
    %c0_i32_0 = arith.constant 0 : i32
    %2 = arith.cmpi ne, %1, %c0_i32_0 : i32
    scf.if %2 {
      %cst_32 = arith.constant 0xFF800000 : f32
      %43 = vector.broadcast %cst_32 : f32 to vector<8x1xf32>
      %c0_33 = arith.constant 0 : index
      %c0_34 = arith.constant 0 : index
      %44 = vector.load %arg8[%c0_33, %c0_34] : memref<8x1xf32, #tpu.memory_space<vmem>>, vector<8x1xf32>
      tpu.vector_store %arg8[%c0_33, %c0_34], %43 {strides = array<i32>} : memref<8x1xf32, #tpu.memory_space<vmem>>, vector<8x1xf32>,
      %cst_35 = arith.constant 0.000000e+00 : f32
      %45 = vector.broadcast %cst_35 : f32 to vector<8x1xf32>
      %c0_36 = arith.constant 0 : index
      %c0_37 = arith.constant 0 : index
      %46 = vector.load %arg9[%c0_36, %c0_37] : memref<8x1xf32, #tpu.memory_space<vmem>>, vector<8x1xf32>
      tpu.vector_store %arg9[%c0_36, %c0_37], %45 {strides = array<i32>} : memref<8x1xf32, #tpu.memory_space<vmem>>, vector<8x1xf32>,
      %cst_38 = arith.constant 0.000000e+00 : f32
      %47 = vector.broadcast %cst_38 : f32 to vector<8x32xf32>
      %c0_39 = arith.constant 0 : index
      %c0_40 = arith.constant 0 : index
      %48 = vector.load %arg10[%c0_39, %c0_40] : memref<8x32xf32, #tpu.memory_space<vmem>>, vector<8x32xf32>
      tpu.vector_store %arg10[%c0_39, %c0_40], %47 {strides = array<i32>} : memref<8x32xf32, #tpu.memory_space<vmem>>, vector<8x32xf32>,
    } else {
    }
    %c0 = arith.constant 0 : index
    %c0_1 = arith.constant 0 : index
    %c0_2 = arith.constant 0 : index
    %3 = vector.load %arg3[%c0, %c0_1, %c0_2] : memref<1x8x32xf32, #tpu.memory_space<vmem>>, vector<1x8x32xf32>
    %4 = vector.shape_cast %3 : vector<1x8x32xf32> to vector<8x32xf32>
    %c0_3 = arith.constant 0 : index
    %c0_4 = arith.constant 0 : index
    %c0_5 = arith.constant 0 : index
    %5 = vector.load %arg4[%c0_3, %c0_4, %c0_5] : memref<1x8x32xf32, #tpu.memory_space<vmem>>, vector<1x8x32xf32>
    %6 = vector.shape_cast %5 : vector<1x8x32xf32> to vector<8x32xf32>
    %c0_6 = arith.constant 0 : index
    %c0_7 = arith.constant 0 : index
    %c0_8 = arith.constant 0 : index
    %7 = vector.load %arg5[%c0_6, %c0_7, %c0_8] : memref<1x8x32xf32, #tpu.memory_space<vmem>>, vector<1x8x32xf32>
    %8 = vector.shape_cast %7 : vector<1x8x32xf32> to vector<8x32xf32>
    %cst = arith.constant dense<0.000000e+00> : vector<8x8xf32>
    %9 = tpu.matmul %4, %6, %cst {dimension_numbers = #tpu.dot_dimension_numbers<[1], [1], [0], [0], [0, 0, 1, 0], [], []>} : vector<8x32xf32>, vector<8x32xf32>, vector<8x8xf32> -> vector<8x8xf32>
    %cst_9 = arith.constant 0.176776692 : f32
    %10 = vector.broadcast %cst_9 : f32 to vector<8x8xf32>
    %11 = arith.mulf %9, %10 : vector<8x8xf32>
    %c0_10 = arith.constant 0 : index
    %c0_11 = arith.constant 0 : index
    %c0_12 = arith.constant 0 : index
    %12 = vector.load %arg6[%c0_10, %c0_11, %c0_12] : memref<1x8x8xi32, #tpu.memory_space<vmem>>, vector<1x8x8xi32>
    %13 = vector.shape_cast %12 : vector<1x8x8xi32> to vector<8x8xi32>
    %c0_i32_13 = arith.constant 0 : i32
    %14 = vector.broadcast %c0_i32_13 : i32 to vector<8x8xi32>
    %15 = arith.cmpi ne, %13, %14 : vector<8x8xi32>
    %cst_14 = arith.constant -1.000000e+09 : f32
    %16 = vector.broadcast %cst_14 : f32 to vector<8x8xf32>
    %17 = arith.select %15, %16, %11 : vector<8x8xi1>, vector<8x8xf32>
    %c0_15 = arith.constant 0 : index
    %c0_16 = arith.constant 0 : index
    %18 = vector.load %arg8[%c0_15, %c0_16] : memref<8x1xf32, #tpu.memory_space<vmem>>, vector<8x1xf32>
    %cst_17 = arith.constant dense<0xFF800000> : vector<8xf32>
    %19 = vector.multi_reduction <maximumf>, %17, %cst_17 [1] : vector<8x8xf32> to vector<8xf32>
    %20 = vector.shape_cast %19 : vector<8xf32> to vector<8x1xf32>
    %21 = arith.maximumf %18, %20 : vector<8x1xf32>
    %22 = arith.subf %18, %21 : vector<8x1xf32>
    %23 = math.exp %22 : vector<8x1xf32>
    %24 = vector.broadcast %21 : vector<8x1xf32> to vector<8x8xf32>
    %25 = arith.subf %17, %24 : vector<8x8xf32>
    %26 = math.exp %25 : vector<8x8xf32>
    %c0_18 = arith.constant 0 : index
    %c0_19 = arith.constant 0 : index
    %27 = vector.load %arg9[%c0_18, %c0_19] : memref<8x1xf32, #tpu.memory_space<vmem>>, vector<8x1xf32>
    %28 = arith.mulf %23, %27 : vector<8x1xf32>
    %cst_20 = arith.constant dense<0.000000e+00> : vector<8xf32>
    %29 = vector.multi_reduction <add>, %26, %cst_20 [1] : vector<8x8xf32> to vector<8xf32>
    %30 = vector.shape_cast %29 : vector<8xf32> to vector<8x1xf32>
    %31 = arith.addf %28, %30 : vector<8x1xf32>
    %c0_21 = arith.constant 0 : index
    %c0_22 = arith.constant 0 : index
    %32 = vector.load %arg9[%c0_21, %c0_22] : memref<8x1xf32, #tpu.memory_space<vmem>>, vector<8x1xf32>
    tpu.vector_store %arg9[%c0_21, %c0_22], %31 {strides = array<i32>} : memref<8x1xf32, #tpu.memory_space<vmem>>, vector<8x1xf32>,
    %c0_23 = arith.constant 0 : index
    %c0_24 = arith.constant 0 : index
    %33 = vector.load %arg10[%c0_23, %c0_24] : memref<8x32xf32, #tpu.memory_space<vmem>>, vector<8x32xf32>
    %34 = vector.broadcast %23 : vector<8x1xf32> to vector<8x32xf32>
    %35 = arith.mulf %34, %33 : vector<8x32xf32>
    %cst_25 = arith.constant dense<0.000000e+00> : vector<8x32xf32>
    %36 = tpu.matmul %26, %8, %cst_25 {dimension_numbers = #tpu.dot_dimension_numbers<[1], [0], [0], [1], [0, 0, 1, 1], [], []>} : vector<8x8xf32>, vector<8x32xf32>, vector<8x32xf32> -> vector<8x32xf32>
    %37 = arith.addf %35, %36 : vector<8x32xf32>
    %c0_26 = arith.constant 0 : index
    %c0_27 = arith.constant 0 : index
    %38 = vector.load %arg10[%c0_26, %c0_27] : memref<8x32xf32, #tpu.memory_space<vmem>>, vector<8x32xf32>
    tpu.vector_store %arg10[%c0_26, %c0_27], %37 {strides = array<i32>} : memref<8x32xf32, #tpu.memory_space<vmem>>, vector<8x32xf32>,
    %c0_28 = arith.constant 0 : index
    %c0_29 = arith.constant 0 : index
    %39 = vector.load %arg8[%c0_28, %c0_29] : memref<8x1xf32, #tpu.memory_space<vmem>>, vector<8x1xf32>
    tpu.vector_store %arg8[%c0_28, %c0_29], %21 {strides = array<i32>} : memref<8x1xf32, #tpu.memory_space<vmem>>, vector<8x1xf32>,
    %c0_i32_30 = arith.constant 0 : i32
    %40 = arith.cmpi eq, %arg2, %c0_i32_30 : i32
    %41 = arith.extui %40 : i1 to i32
    %c0_i32_31 = arith.constant 0 : i32
    %42 = arith.cmpi ne, %41, %c0_i32_31 : i32
    scf.if %42 {
      %c0_32 = arith.constant 0 : index
      %c0_33 = arith.constant 0 : index
      %43 = vector.load %arg10[%c0_32, %c0_33] : memref<8x32xf32, #tpu.memory_space<vmem>>, vector<8x32xf32>
      %c0_34 = arith.constant 0 : index
      %c0_35 = arith.constant 0 : index
      %44 = vector.load %arg9[%c0_34, %c0_35] : memref<8x1xf32, #tpu.memory_space<vmem>>, vector<8x1xf32>
      %45 = vector.broadcast %44 : vector<8x1xf32> to vector<8x32xf32>
      %46 = arith.divf %43, %45 : vector<8x32xf32>
      %c0_36 = arith.constant 0 : index
      %c0_37 = arith.constant 0 : index
      %c0_38 = arith.constant 0 : index
      %47 = vector.load %arg7[%c0_36, %c0_37, %c0_38] : memref<1x8x32xf32, #tpu.memory_space<vmem>>, vector<1x8x32xf32>
      %48 = vector.shape_cast %47 : vector<1x8x32xf32> to vector<8x32xf32>
      %49 = vector.shape_cast %46 : vector<8x32xf32> to vector<1x8x32xf32>
      tpu.vector_store %arg7[%c0_36, %c0_37, %c0_38], %49 {strides = array<i32>} : memref<1x8x32xf32, #tpu.memory_space<vmem>>, vector<1x8x32xf32>,
    } else {
    }
    return
  }
  func.func @transform_0(%arg0: i32, %arg1: i32, %arg2: i32) -> (i32, i32, i32) {
    %c0_i32 = arith.constant 0 : i32
    %c0_i32_0 = arith.constant 0 : i32
    return %arg0, %arg1, %c0_i32 : i32, i32, i32
  }
  func.func @transform_1(%arg0: i32, %arg1: i32, %arg2: i32) -> (i32, i32, i32) {
    %c0_i32 = arith.constant 0 : i32
    %c0_i32_0 = arith.constant 0 : i32
    return %arg0, %arg2, %c0_i32 : i32, i32, i32
  }
  func.func @transform_2(%arg0: i32, %arg1: i32, %arg2: i32) -> (i32, i32, i32) {
    %c0_i32 = arith.constant 0 : i32
    %c0_i32_0 = arith.constant 0 : i32
    return %arg0, %arg2, %c0_i32 : i32, i32, i32
  }
  func.func @transform_3(%arg0: i32, %arg1: i32, %arg2: i32) -> (i32, i32, i32) {
    %c0_i32 = arith.constant 0 : i32
    return %arg0, %arg1, %arg2 : i32, i32, i32
  }
  func.func @transform_4(%arg0: i32, %arg1: i32, %arg2: i32) -> (i32, i32, i32) {
    %c0_i32 = arith.constant 0 : i32
    %c0_i32_0 = arith.constant 0 : i32
    return %arg0, %arg1, %c0_i32 : i32, i32, i32
  }
}

</mosaic_0001>

<llo_original>
// kernel: tpu_custom_call.1
$region0: #{tpu_custom_call.1}
  #allocation0 [shape = 'u32[]', space=smem, size = 0x4, offset = 0x4, fixed_abs, tag = 'smem constant byte address 0x4 - core index']
  #allocation1 [shape = 'u32[144,128]{1,0:T(1,128)}', space=vmem, size = 0x12000, scoped, tag = 'internal scratch']
  #allocation2 [shape = 'f32[8,1]{1,0:T(8,128)}', space=vmem, size = 0x1000, scoped, tag = 'scratch operand']
  #allocation3 [shape = 'f32[8,1]{1,0:T(8,128)}', space=vmem, size = 0x1000, scoped, tag = 'scratch operand']
  #allocation4 [shape = 'f32[8,32]{1,0:T(8,128)}', space=vmem, size = 0x1000, scoped, tag = 'scratch operand']
  %s0 = inlined_call_operand.hbm [shape: f32[8,8,32], index: 0, kind: input, shape index: {}]
  %s1 = inlined_call_operand.hbm [shape: f32[8,8,32], index: 1, kind: input, shape index: {}]
  %s2 = inlined_call_operand.hbm [shape: f32[8,8,32], index: 2, kind: input, shape index: {}]
  %s3 = inlined_call_operand.hbm [shape: s32[8,8,8], index: 3, kind: input, shape index: {}]
  %s4 = inlined_call_operand.hbm [shape: f32[8,8,32], index: 4, kind: output, shape index: {}]
  %s5 = sld [smem:[#allocation0]]
  $region73: #{tpu_custom_call.1} parent=0
    _
  %s7 = ssub.s32 1, %s5
  %s8 = scalar_select 0, %s7, %s5
  $region1: #{tpu_custom_call.1} parent=0
    #allocation5 [shape = 'u8[8192]{0}', space=vmem, size = 0x2000, scoped, tag = 'input window, operand 0']
    #allocation6 [shape = 's32[2]{0}', space=sflag, size = 0x8, scoped, tag = 'scoped memory for tpu_custom_call.1']
    #allocation7 [shape = 's32[2]{0}', space=sflag, size = 0x8, scoped, tag = 'scoped memory for tpu_custom_call.1']
    #allocation8 [shape = 'u8[8192]{0}', space=vmem, size = 0x2000, scoped, tag = 'input window, operand 1']
    #allocation9 [shape = 's32[2]{0}', space=sflag, size = 0x8, scoped, tag = 'scoped memory for tpu_custom_call.1']
    #allocation10 [shape = 'u8[8192]{0}', space=vmem, size = 0x2000, scoped, tag = 'input window, operand 2']
    #allocation11 [shape = 'u8[8192]{0}', space=vmem, size = 0x2000, scoped, tag = 'input window, operand 3']
    #allocation12 [shape = 's32[2]{0}', space=sflag, size = 0x8, scoped, tag = 'scoped memory for tpu_custom_call.1']
    #allocation13 [shape = 'u8[8192]{0}', space=vmem, size = 0x2000, scoped, tag = 'output window, operand 0']
    %9 = vsyncpa [#allocation6], 0
    %s10 = scalar_lea.sflag [#allocation6], 1
    %11 = vsyncpa %s10, 0
    %12 = vsyncpa [#allocation9], 0
    %s13 = scalar_lea.sflag [#allocation9], 1
    %14 = vsyncpa %s13, 0
    %15 = vsyncpa [#allocation12], 0
    %s16 = scalar_lea.sflag [#allocation12], 1
    %17 = vsyncpa %s16, 0
    %18 = vsyncpa [#allocation7], 0
    %s19 = scalar_lea.sflag [#allocation7], 1
    %20 = vsyncpa %s19, 0
    loop: start=0, step=1, limit=10
    $region2: #{tpu_custom_call.1} parent=1 // loop_pre_header
      _
    $region3: #{tpu_custom_call.1} parent=1 // loop_header
      %s22 = sphi 0, %s26
      %p23 = scmp.ge.s32.totalorder %s22, 10
      %s29 = sphi 0, %s48
      %s30 = sphi 0, %s44
      %s31 = sphi 0, %s40
      %s32 = sphi 0, %s29
      %s33 = sphi 0, %s30
      %s34 = sphi 0, %s31
      %s35 = sphi 0, %s32
      %s36 = sphi 0, %s33
      %s37 = sphi 0, %s34
      %s53 = sphi 0, %s55
      %s56 = sphi 0, %s53
      %s57 = sphi 0, %s56
      %s73 = sphi 0, %s57
      %s81 = sphi 0, %s83
      %s84 = sphi 0, %s81
      %s85 = sphi 0, %s84
      %s101 = sphi 0, %s85
      %s109 = sphi 0, %s111
      %s112 = sphi 0, %s109
      %s113 = sphi 0, %s112
      %s129 = sphi 0, %s113
      %s139 = sphi 0, %s141
      %s142 = sphi 0, %s139
      %s143 = sphi 0, %s142
      %s159 = sphi 0, %s143
      %s167 = sphi 0, %s169
      %s170 = sphi 0, %s167
      %s171 = sphi 0, %s170
      %s187 = sphi 0, %s171
    $region4: #{tpu_custom_call.1} parent=1 // loop_header_branch
      %25 = sbr.rel (%p23) target = $region8
    $region5: #{tpu_custom_call.1} parent=1 // loop_body
      %s27 = ssub.s32 %s22, 1
      %s28 = ssub.s32 %s22, 2
      %s38 = sadd.s32 1, %s31
      %p39 = scmp.ge.s32.totalorder %s38, 1
      %s40 = scalar_select %p39, 0, %s38
      %s41 = sadd.s32 1, %s30
      %s42 = scalar_select %p39, %s41, %s30
      %p43 = scmp.ge.s32.totalorder %s42, 1
      %s44 = scalar_select %p43, 0, %s42
      %s45 = sadd.s32 1, %s29
      %s46 = scalar_select %p43, %s45, %s29
      %p47 = scmp.ge.s32.totalorder %s46, 8
      %s48 = scalar_select %p47, 0, %s46
      %s49 = ssub.s32 %s29, %s48
      %s50 = ssub.s32 %s30, %s44
      %s51 = sor.u32 %s49, %s50
      %p52 = scmp.eq.s32.totalorder %s51, 0
      %s54 = sadd.s32 %s53, 1
      %s55 = scalar_select %p52, %s53, %s54
      %p58 = pneg %p52
      %p59 = scmp.eq.s32.totalorder %s22, 7
      %p60 = por %p58, %p59
      %p61 = scmp.ne.s32.totalorder %s53, %s56
      %p62 = scmp.eq.s32.totalorder %s22, 0
      %p63 = por %p61, %p62
      %p64 = scmp.ne.s32.totalorder %s53, %s56
      %p65 = scmp.eq.s32.totalorder %s27, 7
      %p66 = por %p64, %p65
      %p67 = scmp.ne.s32.totalorder %s56, %s57
      %p68 = scmp.eq.s32.totalorder %s27, 0
      %p69 = por %p67, %p68
      %p70 = scmp.ne.s32.totalorder %s56, %s57
      %p71 = scmp.eq.s32.totalorder %s28, 7
      %p72 = por %p70, %p71
      %p74 = scmp.ne.s32.totalorder %s57, %s73
      %p75 = scmp.eq.s32.totalorder %s28, 0
      %p76 = por %p74, %p75
      %s77 = ssub.s32 %s29, %s48
      %s78 = ssub.s32 %s31, %s40
      %s79 = sor.u32 %s77, %s78
      %p80 = scmp.eq.s32.totalorder %s79, 0
      %s82 = sadd.s32 %s81, 1
      %s83 = scalar_select %p80, %s81, %s82
      %p86 = pneg %p80
      %p87 = scmp.eq.s32.totalorder %s22, 7
      %p88 = por %p86, %p87
      %p89 = scmp.ne.s32.totalorder %s81, %s84
      %p90 = scmp.eq.s32.totalorder %s22, 0
      %p91 = por %p89, %p90
      %p92 = scmp.ne.s32.totalorder %s81, %s84
      %p93 = scmp.eq.s32.totalorder %s27, 7
      %p94 = por %p92, %p93
      %p95 = scmp.ne.s32.totalorder %s84, %s85
      %p96 = scmp.eq.s32.totalorder %s27, 0
      %p97 = por %p95, %p96
      %p98 = scmp.ne.s32.totalorder %s84, %s85
      %p99 = scmp.eq.s32.totalorder %s28, 7
      %p100 = por %p98, %p99
      %p102 = scmp.ne.s32.totalorder %s85, %s101
      %p103 = scmp.eq.s32.totalorder %s28, 0
      %p104 = por %p102, %p103
      %s105 = ssub.s32 %s29, %s48
      %s106 = ssub.s32 %s31, %s40
      %s107 = sor.u32 %s105, %s106
      %p108 = scmp.eq.s32.totalorder %s107, 0
      %s110 = sadd.s32 %s109, 1
      %s111 = scalar_select %p108, %s109, %s110
      %p114 = pneg %p108
      %p115 = scmp.eq.s32.totalorder %s22, 7
      %p116 = por %p114, %p115
      %p117 = scmp.ne.s32.totalorder %s109, %s112
      %p118 = scmp.eq.s32.totalorder %s22, 0
      %p119 = por %p117, %p118
      %p120 = scmp.ne.s32.totalorder %s109, %s112
      %p121 = scmp.eq.s32.totalorder %s27, 7
      %p122 = por %p120, %p121
      %p123 = scmp.ne.s32.totalorder %s112, %s113
      %p124 = scmp.eq.s32.totalorder %s27, 0
      %p125 = por %p123, %p124
      %p126 = scmp.ne.s32.totalorder %s112, %s113
      %p127 = scmp.eq.s32.totalorder %s28, 7
      %p128 = por %p126, %p127
      %p130 = scmp.ne.s32.totalorder %s113, %s129
      %p131 = scmp.eq.s32.totalorder %s28, 0
      %p132 = por %p130, %p131
      %s133 = ssub.s32 %s29, %s48
      %s134 = ssub.s32 %s30, %s44
      %s135 = sor.u32 %s133, %s134
      %s136 = ssub.s32 %s31, %s40
      %s137 = sor.u32 %s135, %s136
      %p138 = scmp.eq.s32.totalorder %s137, 0
      %s140 = sadd.s32 %s139, 1
      %s141 = scalar_select %p138, %s139, %s140
      %p144 = pneg %p138
      %p145 = scmp.eq.s32.totalorder %s22, 7
      %p146 = por %p144, %p145
      %p147 = scmp.ne.s32.totalorder %s139, %s142
      %p148 = scmp.eq.s32.totalorder %s22, 0
      %p149 = por %p147, %p148
      %p150 = scmp.ne.s32.totalorder %s139, %s142
      %p151 = scmp.eq.s32.totalorder %s27, 7
      %p152 = por %p150, %p151
      %p153 = scmp.ne.s32.totalorder %s142, %s143
      %p154 = scmp.eq.s32.totalorder %s27, 0
      %p155 = por %p153, %p154
      %p156 = scmp.ne.s32.totalorder %s142, %s143
      %p157 = scmp.eq.s32.totalorder %s28, 7
      %p158 = por %p156, %p157
      %p160 = scmp.ne.s32.totalorder %s143, %s159
      %p161 = scmp.eq.s32.totalorder %s28, 0
      %p162 = por %p160, %p161
      %s163 = ssub.s32 %s29, %s48
      %s164 = ssub.s32 %s30, %s44
      %s165 = sor.u32 %s163, %s164
      %p166 = scmp.eq.s32.totalorder %s165, 0
      %s168 = sadd.s32 %s167, 1
      %s169 = scalar_select %p166, %s167, %s168
      %p172 = pneg %p166
      %p173 = scmp.eq.s32.totalorder %s22, 7
      %p174 = por %p172, %p173
      %p175 = scmp.ne.s32.totalorder %s167, %s170
      %p176 = scmp.eq.s32.totalorder %s22, 0
      %p177 = por %p175, %p176
      %p178 = scmp.ne.s32.totalorder %s167, %s170
      %p179 = scmp.eq.s32.totalorder %s27, 7
      %p180 = por %p178, %p179
      %p181 = scmp.ne.s32.totalorder %s170, %s171
      %p182 = scmp.eq.s32.totalorder %s27, 0
      %p183 = por %p181, %p182
      %p184 = scmp.ne.s32.totalorder %s170, %s171
      %p185 = scmp.eq.s32.totalorder %s28, 7
      %p186 = por %p184, %p185
      %p188 = scmp.ne.s32.totalorder %s171, %s187
      %p189 = scmp.eq.s32.totalorder %s28, 0
      %p190 = por %p188, %p189
      %p191 = scmp.le.s32.totalorder 1, %s22
      %p192 = scmp.lt.s32.totalorder %s22, 9
      %p193 = pnand %p191, %p192
      %p194 = pneg %p193
      // Predicated region
      $region9: #{tpu_custom_call.1} parent=5 // pred_check
        _
      $region10: #{tpu_custom_call.1} parent=5 // pred_check_branch
        %196 = sbr.rel (%p193) target = $region12
      $region11: #{tpu_custom_call.1} parent=5 // pred_region
        %s197 = ssub.s32 %s22, 1
      $region12: #{tpu_custom_call.1} parent=5 // pred_fallthru
        _
      %p198 = scmp.lt.s32.totalorder %s22, 8
      // Predicated region
      $region13: #{tpu_custom_call.1} parent=5 // pred_check
        %p199 = pneg %p198
      $region14: #{tpu_custom_call.1} parent=5 // pred_check_branch
        %201 = sbr.rel (%p199) target = $region16
      $region15: #{tpu_custom_call.1} parent=5 // pred_region
        // Predicated region
        $region17: #{tpu_custom_call.1} parent=15 // pred_check
          %p202 = pneg %p63
        $region18: #{tpu_custom_call.1} parent=15 // pred_check_branch
          %204 = sbr.rel (%p202) target = $region20
        $region19: #{tpu_custom_call.1} parent=15 // pred_region
          %s205 = sand.u32 %s53, 1
          %s206 = scalar_lea.sflag [#allocation6], %s205
          %s207 = sand.u32 %s53, 1
          %s208 = smul.addr %s207, 8
          %s209 = scalar_lea.vmem [#allocation5], %s208
          %s211 = ssub.s32 128, 128
          %212 = vsyncadd %s206, %s211
          %s213 = sadd.s32 %s30, %s29
          %s214 = smul.addr %s213, 128
          %s215 = scalar_lea.hbm %s0, %s214
          %s217 = sshll.u32 %s209, 4
          %s218 = int_to_ptr.vmem [resolvable:$true] %s217
          %220 = dma.hbm_to_vmem [thread:$0]  %s215, 128, %s218, %s206
        $region20: #{tpu_custom_call.1} parent=15 // pred_fallthru
          _
        // Predicated region
        $region21: #{tpu_custom_call.1} parent=15 // pred_check
          %p221 = pneg %p91
        $region22: #{tpu_custom_call.1} parent=15 // pred_check_branch
          %223 = sbr.rel (%p221) target = $region24
        $region23: #{tpu_custom_call.1} parent=15 // pred_region
          %s224 = sand.u32 %s22, 1
          %s225 = scalar_lea.sflag [#allocation9], %s224
          %s226 = sand.u32 %s81, 1
          %s227 = smul.addr %s226, 8
          %s228 = scalar_lea.vmem [#allocation8], %s227
          %s230 = ssub.s32 128, 128
          %231 = vsyncadd %s225, %s230
          %s232 = sadd.s32 %s31, %s29
          %s233 = smul.addr %s232, 128
          %s234 = scalar_lea.hbm %s1, %s233
          %s236 = sshll.u32 %s228, 4
          %s237 = int_to_ptr.vmem [resolvable:$true] %s236
          %239 = dma.hbm_to_vmem [thread:$0]  %s234, 128, %s237, %s225
        $region24: #{tpu_custom_call.1} parent=15 // pred_fallthru
          _
        // Predicated region
        $region25: #{tpu_custom_call.1} parent=15 // pred_check
          %p240 = pneg %p119
        $region26: #{tpu_custom_call.1} parent=15 // pred_check_branch
          %242 = sbr.rel (%p240) target = $region28
        $region27: #{tpu_custom_call.1} parent=15 // pred_region
          %s243 = sand.u32 %s22, 1
          %s244 = scalar_lea.sflag [#allocation9], %s243
          %s245 = sand.u32 %s109, 1
          %s246 = smul.addr %s245, 8
          %s247 = scalar_lea.vmem [#allocation10], %s246
          %s249 = ssub.s32 128, 128
          %250 = vsyncadd %s244, %s249
          %s251 = sadd.s32 %s31, %s29
          %s252 = smul.addr %s251, 128
          %s253 = scalar_lea.hbm %s2, %s252
          %s255 = sshll.u32 %s247, 4
          %s256 = int_to_ptr.vmem [resolvable:$true] %s255
          %258 = dma.hbm_to_vmem [thread:$0]  %s253, 128, %s256, %s244
        $region28: #{tpu_custom_call.1} parent=15 // pred_fallthru
          _
        // Predicated region
        $region29: #{tpu_custom_call.1} parent=15 // pred_check
          %p259 = pneg %p149
        $region30: #{tpu_custom_call.1} parent=15 // pred_check_branch
          %261 = sbr.rel (%p259) target = $region32
        $region31: #{tpu_custom_call.1} parent=15 // pred_region
          %s262 = sand.u32 %s139, 1
          %s263 = scalar_lea.sflag [#allocation12], %s262
          %s264 = sand.u32 %s139, 1
          %s265 = smul.addr %s264, 8
          %s266 = scalar_lea.vmem [#allocation11], %s265
          %s268 = ssub.s32 128, 128
          %269 = vsyncadd %s263, %s268
          %s270 = sadd.s32 %s31, %s30
          %s271 = sadd.s32 %s270, %s29
          %s272 = smul.addr %s271, 128
          %s273 = scalar_lea.hbm %s3, %s272
          %s275 = sshll.u32 %s266, 4
          %s276 = int_to_ptr.vmem [resolvable:$true] %s275
          %278 = dma.hbm_to_vmem [thread:$0]  %s273, 128, %s276, %s263
        $region32: #{tpu_custom_call.1} parent=15 // pred_fallthru
          _
      $region16: #{tpu_custom_call.1} parent=5 // pred_fallthru
        _
      %p279 = scmp.le.s32.totalorder 1, %s22
      %p280 = scmp.lt.s32.totalorder %s22, 9
      %p281 = pnand %p279, %p280
      %p282 = pneg %p281
      // Predicated region
      $region33: #{tpu_custom_call.1} parent=5 // pred_check
        _
      $region34: #{tpu_custom_call.1} parent=5 // pred_check_branch
        %284 = sbr.rel (%p281) target = $region36
      $region35: #{tpu_custom_call.1} parent=5 // pred_region
        %s285 = ssub.s32 %s22, 1
        %s286 = sand.u32 %s56, 1
        %s287 = scalar_lea.sflag [#allocation6], %s286
        %s288 = sand.u32 %s56, 1
        %s289 = smul.addr %s288, 8
        %s290 = scalar_lea.vmem [#allocation5], %s289
        // Predicated region
        $region37: #{tpu_custom_call.1} parent=35 // pred_check
          %p291 = pneg %p69
        $region38: #{tpu_custom_call.1} parent=35 // pred_check_branch
          %293 = sbr.rel (%p291) target = $region40
        $region39: #{tpu_custom_call.1} parent=35 // pred_region
          %294 = dma.done %s287, 128
        $region40: #{tpu_custom_call.1} parent=35 // pred_fallthru
          _
        %s295 = sand.u32 %s27, 1
        %s296 = scalar_lea.sflag [#allocation9], %s295
        %s297 = sand.u32 %s84, 1
        %s298 = smul.addr %s297, 8
        %s299 = scalar_lea.vmem [#allocation8], %s298
        // Predicated region
        $region41: #{tpu_custom_call.1} parent=35 // pred_check
          %p300 = pneg %p97
        $region42: #{tpu_custom_call.1} parent=35 // pred_check_branch
          %302 = sbr.rel (%p300) target = $region44
        $region43: #{tpu_custom_call.1} parent=35 // pred_region
          %303 = dma.done %s296, 128
        $region44: #{tpu_custom_call.1} parent=35 // pred_fallthru
          _
        %s304 = sand.u32 %s27, 1
        %s305 = scalar_lea.sflag [#allocation9], %s304
        %s306 = sand.u32 %s112, 1
        %s307 = smul.addr %s306, 8
        %s308 = scalar_lea.vmem [#allocation10], %s307
        // Predicated region
        $region45: #{tpu_custom_call.1} parent=35 // pred_check
          %p309 = pneg %p125
        $region46: #{tpu_custom_call.1} parent=35 // pred_check_branch
          %311 = sbr.rel (%p309) target = $region48
        $region47: #{tpu_custom_call.1} parent=35 // pred_region
          %312 = dma.done %s305, 128
        $region48: #{tpu_custom_call.1} parent=35 // pred_fallthru
          _
        %s313 = sand.u32 %s142, 1
        %s314 = scalar_lea.sflag [#allocation12], %s313
        %s315 = sand.u32 %s142, 1
        %s316 = smul.addr %s315, 8
        %s317 = scalar_lea.vmem [#allocation11], %s316
        // Predicated region
        $region49: #{tpu_custom_call.1} parent=35 // pred_check
          %p318 = pneg %p155
        $region50: #{tpu_custom_call.1} parent=35 // pred_check_branch
          %320 = sbr.rel (%p318) target = $region52
        $region51: #{tpu_custom_call.1} parent=35 // pred_region
          %321 = dma.done %s314, 128
        $region52: #{tpu_custom_call.1} parent=35 // pred_fallthru
          _
        %s322 = sand.u32 %s56, 1
        %s323 = scalar_lea.sflag [#allocation6], %s322
        %s324 = sand.u32 %s56, 1
        %s325 = smul.addr %s324, 8
        %s326 = scalar_lea.vmem [#allocation5], %s325
        %p327 = pneg %p69
        %p328 = pneg %p66
        %s329 = sand.u32 %s27, 1
        %s330 = scalar_lea.sflag [#allocation9], %s329
        %s331 = sand.u32 %s84, 1
        %s332 = smul.addr %s331, 8
        %s333 = scalar_lea.vmem [#allocation8], %s332
        %p334 = pneg %p97
        %p335 = pneg %p94
        %s336 = sand.u32 %s27, 1
        %s337 = scalar_lea.sflag [#allocation9], %s336
        %s338 = sand.u32 %s112, 1
        %s339 = smul.addr %s338, 8
        %s340 = scalar_lea.vmem [#allocation10], %s339
        %p341 = pneg %p125
        %p342 = pneg %p122
        %s343 = sand.u32 %s142, 1
        %s344 = scalar_lea.sflag [#allocation12], %s343
        %s345 = sand.u32 %s142, 1
        %s346 = smul.addr %s345, 8
        %s347 = scalar_lea.vmem [#allocation11], %s346
        %p348 = pneg %p155
        %p349 = pneg %p152
        %p350 = pneg %p183
        %p351 = pneg %p180
        %s352 = sand.u32 %s170, 1
        %s353 = scalar_lea.sflag [#allocation7], %s352
        %s354 = sand.u32 %s170, 1
        %s355 = smul.addr %s354, 8
        %s356 = scalar_lea.vmem [#allocation13], %s355
        %p357 = scmp.eq.s32.totalorder %s34, 0
        // Predicated region
        $region53: #{tpu_custom_call.1} parent=35 // pred_check
          %p358 = pneg %p357
        $region54: #{tpu_custom_call.1} parent=35 // pred_check_branch
          %360 = sbr.rel (%p358) target = $region56
        $region55: #{tpu_custom_call.1} parent=35 // pred_region
          %vm361 = vcmask 7168
          %362 = vst.msk [vmem:[#allocation2] sm:$0xff] %vm361, -inf
          %363 = vst.msk [vmem:[#allocation3] sm:$0xff] %vm361, 0.0
          %vm364 = vcmask 261120
          %365 = vst.msk [vmem:[#allocation4] sm:$0xff] %vm364, 0.0
        $region56: #{tpu_custom_call.1} parent=35 // pred_fallthru
          _
        %v366 = vld [vmem:[%s290] sm:$0xff]
        %v367 = vld [vmem:[%s299] sm:$0xff]
        %v368 = vld [vmem:[%s308] sm:$0xff]
        %vm369 = vcmask 261120
        %v371 = vsel %vm369, %v366, 0
        %v374 = vsel %vm369, %v367, 0
        %376 = vmatprep.subr.mxu0 0.0
        %377 = vmatpush1.xpose.msra.mxu0 %v374
        %378 = vmatprep.subr.mxu0 0.0
        %379 = vmatpush1.xpose.msra.mxu0 0.0
        %380 = vmatprep.subr.mxu0 0.0
        %381 = vmatpush1.xpose.msra.mxu0 0.0
        %382 = vmatprep.subr.mxu0 0.0
        %383 = vmatpush1.xpose.msra.mxu0 0.0
        %384 = vmatprep.subr.mxu0 0.0
        %385 = vmatpush1.xpose.msra.mxu0 0.0
        %386 = vmatprep.subr.mxu0 0.0
        %387 = vmatpush1.xpose.msra.mxu0 0.0
        %388 = vmatprep.subr.mxu0 0.0
        %389 = vmatpush1.xpose.msra.mxu0 0.0
        %390 = vmatprep.subr.mxu0 0.0
        %391 = vmatpush1.xpose.msra.mxu0 0.0
        %392 = vmatprep.subr.mxu0 0.0
        %393 = vmatpush1.xpose.msra.mxu0 0.0
        %394 = vmatprep.subr.mxu0 0.0
        %395 = vmatpush1.xpose.msra.mxu0 0.0
        %396 = vmatprep.subr.mxu0 0.0
        %397 = vmatpush1.xpose.msra.mxu0 0.0
        %398 = vmatprep.subr.mxu0 0.0
        %399 = vmatpush1.xpose.msra.mxu0 0.0
        %400 = vmatprep.subr.mxu0 0.0
        %401 = vmatpush1.xpose.msra.mxu0 0.0
        %402 = vmatprep.subr.mxu0 0.0
        %403 = vmatpush1.xpose.msra.mxu0 0.0
        %404 = vmatprep.subr.mxu0 0.0
        %405 = vmatpush1.xpose.msra.mxu0 0.0
        %406 = vmatprep.subr.mxu0 0.0
        %407 = vmatpush1.xpose.msra.mxu0 0.0
        %408 = vmatprep.subr.mxu0 0.0
        %409 = vmatpush1.xpose.msra.mxu0 0.0
        %410 = vmatprep.subr.mxu0 0.0
        %411 = vmatpush1.xpose.msra.mxu0 0.0
        %412 = vmatprep.subr.mxu0 0.0
        %413 = vmatpush1.xpose.msra.mxu0 0.0
        %414 = vmatprep.subr.mxu0 0.0
        %415 = vmatpush1.xpose.msra.mxu0 0.0
        %416 = vmatprep.subr.mxu0 0.0
        %417 = vmatpush1.xpose.msra.mxu0 0.0
        %418 = vmatprep.subr.mxu0 0.0
        %419 = vmatpush1.xpose.msra.mxu0 0.0
        %420 = vmatprep.subr.mxu0 0.0
        %421 = vmatpush1.xpose.msra.mxu0 0.0
        %422 = vmatprep.subr.mxu0 0.0
        %423 = vmatpush1.xpose.msra.mxu0 0.0
        %424 = vmatprep.subr.mxu0 0.0
        %425 = vmatpush1.xpose.msra.mxu0 0.0
        %426 = vmatprep.subr.mxu0 0.0
        %427 = vmatpush1.xpose.msra.mxu0 0.0
        %428 = vmatprep.subr.mxu0 0.0
        %429 = vmatpush1.xpose.msra.mxu0 0.0
        %430 = vmatprep.subr.mxu0 0.0
        %431 = vmatpush1.xpose.msra.mxu0 0.0
        %432 = vmatprep.subr.mxu0 0.0
        %433 = vmatpush1.xpose.msra.mxu0 0.0
        %434 = vmatprep.subr.mxu0 0.0
        %435 = vmatpush1.xpose.msra.mxu0 0.0
        %436 = vmatprep.subr.mxu0 0.0
        %437 = vmatpush1.xpose.msra.mxu0 0.0
        %438 = vmatprep.subr.mxu0 0.0
        %439 = vmatpush1.xpose.msra.mxu0 0.0
        %440 = vmatprep.mubr.f32.mxu0 0.0
        %441 = vmatmul.mubr.f32.gmra.mrb[0].mxu0 %v371
        %v442 = vpop.f32.mrb[0].mxu0
        %v443 = vadd.f32 0.0, %v442
        %v444 = vpop.f32.mrb[0].mxu0
        %445 = vdwg.mxu0
        %v446 = vmul.f32 %v443, 0.17677669
        %v447 = vld [vmem:[%s317] sm:$0xff]
        %vm448 = vcmp.ne.s32.totalorder %v447, 0
        %v449 = vsel %vm448, -1e+09, %v446
        %v450 = vld [vmem:[#allocation2] sm:$0xff]
        %vm451 = vcmask 64512
        %v452 = vsel %vm451, %v449, -inf
        %453 = vmax.xlane.f32.xlu0 %v452
        %v454 = vpop.xlane.xlu0 %453
        %v455 = vmax.f32 %v450, %v454
        %v456 = vsub.f32 %v450, %v455
        %v457 = vmul.f32 %v456, 1.442695
        %v458 = vpow.pop %v457
        %460 = vset.pattern.permute.xlu0 0
        %461 = vperm.xlu0 %460, %v455
        %v462 = vpop.permute.xlu0 %461
        %v464 = vsub.f32 %v449, %v462
        %v465 = vmul.f32 %v464, 1.442695
        %v466 = vpow.pop %v465
        %v467 = vld [vmem:[#allocation3] sm:$0xff]
        %v468 = vmul.f32 %v458, %v467
        %v469 = vsel %vm451, %v466, 0.0
        %470 = vadd.xlane.f32.xlu0 %v469
        %v471 = vpop.xlane.xlu0 %470
        %v472 = vadd.f32 %v468, %v471
        %vm473 = vcmask 7168
        %474 = vst.msk [vmem:[#allocation3] sm:$0xff] %vm473, %v472
        %v475 = vld [vmem:[#allocation4] sm:$0xff]
        %477 = vset.pattern.permute.xlu0 0
        %478 = vperm.xlu0 %477, %v458
        %v479 = vpop.permute.xlu0 %478
        %v481 = vmul.f32 %v479, %v475
        %v483 = vsel %vm451, %v466, 0
        %485 = vmatprep.subr.mxu0 0.0
        %486 = vmatpush1.msra.mxu0 %v368
        %487 = vmatprep.subr.mxu0 0.0
        %488 = vmatpush1.msra.mxu0 0.0
        %489 = vmatprep.subr.mxu0 0.0
        %490 = vmatpush1.msra.mxu0 0.0
        %491 = vmatprep.subr.mxu0 0.0
        %492 = vmatpush1.msra.mxu0 0.0
        %493 = vmatprep.subr.mxu0 0.0
        %494 = vmatpush1.msra.mxu0 0.0
        %495 = vmatprep.subr.mxu0 0.0
        %496 = vmatpush1.msra.mxu0 0.0
        %497 = vmatprep.subr.mxu0 0.0
        %498 = vmatpush1.msra.mxu0 0.0
        %499 = vmatprep.subr.mxu0 0.0
        %500 = vmatpush1.msra.mxu0 0.0
        %501 = vmatprep.subr.mxu0 0.0
        %502 = vmatpush1.msra.mxu0 0.0
        %503 = vmatprep.subr.mxu0 0.0
        %504 = vmatpush1.msra.mxu0 0.0
        %505 = vmatprep.subr.mxu0 0.0
        %506 = vmatpush1.msra.mxu0 0.0
        %507 = vmatprep.subr.mxu0 0.0
        %508 = vmatpush1.msra.mxu0 0.0
        %509 = vmatprep.subr.mxu0 0.0
        %510 = vmatpush1.msra.mxu0 0.0
        %511 = vmatprep.subr.mxu0 0.0
        %512 = vmatpush1.msra.mxu0 0.0
        %513 = vmatprep.subr.mxu0 0.0
        %514 = vmatpush1.msra.mxu0 0.0
        %515 = vmatprep.subr.mxu0 0.0
        %516 = vmatpush1.msra.mxu0 0.0
        %517 = vmatprep.subr.mxu0 0.0
        %518 = vmatpush1.msra.mxu0 0.0
        %519 = vmatprep.subr.mxu0 0.0
        %520 = vmatpush1.msra.mxu0 0.0
        %521 = vmatprep.subr.mxu0 0.0
        %522 = vmatpush1.msra.mxu0 0.0
        %523 = vmatprep.subr.mxu0 0.0
        %524 = vmatpush1.msra.mxu0 0.0
        %525 = vmatprep.subr.mxu0 0.0
        %526 = vmatpush1.msra.mxu0 0.0
        %527 = vmatprep.subr.mxu0 0.0
        %528 = vmatpush1.msra.mxu0 0.0
        %529 = vmatprep.subr.mxu0 0.0
        %530 = vmatpush1.msra.mxu0 0.0
        %531 = vmatprep.subr.mxu0 0.0
        %532 = vmatpush1.msra.mxu0 0.0
        %533 = vmatprep.subr.mxu0 0.0
        %534 = vmatpush1.msra.mxu0 0.0
        %535 = vmatprep.subr.mxu0 0.0
        %536 = vmatpush1.msra.mxu0 0.0
        %537 = vmatprep.subr.mxu0 0.0
        %538 = vmatpush1.msra.mxu0 0.0
        %539 = vmatprep.subr.mxu0 0.0
        %540 = vmatpush1.msra.mxu0 0.0
        %541 = vmatprep.subr.mxu0 0.0
        %542 = vmatpush1.msra.mxu0 0.0
        %543 = vmatprep.subr.mxu0 0.0
        %544 = vmatpush1.msra.mxu0 0.0
        %545 = vmatprep.subr.mxu0 0.0
        %546 = vmatpush1.msra.mxu0 0.0
        %547 = vmatprep.subr.mxu0 0.0
        %548 = vmatpush1.msra.mxu0 0.0
        %549 = vmatprep.mubr.f32.mxu0 0.0
        %550 = vmatmul.mubr.f32.gmra.mrb[0].mxu0 %v483
        %v551 = vpop.f32.mrb[0].mxu0
        %v552 = vadd.f32 0.0, %v551
        %v553 = vpop.f32.mrb[0].mxu0
        %554 = vdwg.mxu0
        %v555 = vadd.f32 %v481, %v552
        %556 = vst.msk [vmem:[#allocation4] sm:$0xff] %vm369, %v555
        %557 = vst.msk [vmem:[#allocation2] sm:$0xff] %vm473, %v455
        // Predicated region
        $region57: #{tpu_custom_call.1} parent=35 // pred_check
          %p558 = pneg %p357
        $region58: #{tpu_custom_call.1} parent=35 // pred_check_branch
          %560 = sbr.rel (%p558) target = $region60
        $region59: #{tpu_custom_call.1} parent=35 // pred_region
          %v561 = vld [vmem:[#allocation4] sm:$0xff]
          %v562 = vld [vmem:[#allocation3] sm:$0xff]
          %564 = vset.pattern.permute.xlu0 0
          %565 = vperm.xlu0 %564, %v562
          %v566 = vpop.permute.xlu0 %565
          %v568 = vrcp.pop %v566
          %v569 = vmul.f32 %v561, %v568
          %570 = vst.msk [vmem:[%s356] sm:$0xff] %vm369, %v569
        $region60: #{tpu_custom_call.1} parent=35 // pred_fallthru
          _
        %s571 = sand.u32 %s170, 1
        %s572 = scalar_lea.sflag [#allocation7], %s571
        %s573 = sand.u32 %s170, 1
        %s574 = smul.addr %s573, 8
        %s575 = scalar_lea.vmem [#allocation13], %s574
        // Predicated region
        $region61: #{tpu_custom_call.1} parent=35 // pred_check
          %p576 = pneg %p180
        $region62: #{tpu_custom_call.1} parent=35 // pred_check_branch
          %578 = sbr.rel (%p576) target = $region64
        $region63: #{tpu_custom_call.1} parent=35 // pred_region
          %s580 = ssub.s32 128, 128
          %581 = vsyncadd %s572, %s580
          %s582 = sadd.s32 %s33, %s32
          %s583 = smul.addr %s582, 128
          %s584 = scalar_lea.hbm %s4, %s583
          %s586 = sshll.u32 %s575, 4
          %s587 = int_to_ptr.vmem [resolvable:$true] %s586
          %589 = dma.vmem_to_hbm [thread:$0]  %s587, 128, %s584, %s572
        $region64: #{tpu_custom_call.1} parent=35 // pred_fallthru
          _
      $region36: #{tpu_custom_call.1} parent=5 // pred_fallthru
        _
      %p590 = scmp.le.s32.totalorder 2, %s22
      // Predicated region
      $region65: #{tpu_custom_call.1} parent=5 // pred_check
        %p591 = pneg %p590
      $region66: #{tpu_custom_call.1} parent=5 // pred_check_branch
        %593 = sbr.rel (%p591) target = $region68
      $region67: #{tpu_custom_call.1} parent=5 // pred_region
        %s594 = ssub.s32 %s22, 2
        // Predicated region
        $region69: #{tpu_custom_call.1} parent=67 // pred_check
          %p595 = pneg %p186
        $region70: #{tpu_custom_call.1} parent=67 // pred_check_branch
          %597 = sbr.rel (%p595) target = $region72
        $region71: #{tpu_custom_call.1} parent=67 // pred_region
          %s598 = sand.u32 %s171, 1
          %s599 = scalar_lea.sflag [#allocation7], %s598
          %s600 = sand.u32 %s171, 1
          %s601 = smul.addr %s600, 8
          %s602 = scalar_lea.vmem [#allocation13], %s601
          %603 = dma.done %s599, 128
        $region72: #{tpu_custom_call.1} parent=67 // pred_fallthru
          _
      $region68: #{tpu_custom_call.1} parent=5 // pred_fallthru
        _
    $region6: #{tpu_custom_call.1} parent=1 // loop_footer
      %s26 = sadd.s32 1, %s22
    $region7: #{tpu_custom_call.1} parent=1 // loop_footer_branch
      %21 = sbr.rel target = $region3
    $region8: #{tpu_custom_call.1} parent=1 // loop_exit
      _
    %604 = vsyncpa [#allocation6], 1
    %s605 = scalar_lea.sflag [#allocation6], 1
    %606 = vsyncpa %s605, 1
    %607 = vsyncpa [#allocation9], 1
    %s608 = scalar_lea.sflag [#allocation9], 1
    %609 = vsyncpa %s608, 1
    %610 = vsyncpa [#allocation12], 1
    %s611 = scalar_lea.sflag [#allocation12], 1
    %612 = vsyncpa %s611, 1
    %613 = vsyncpa [#allocation7], 1
    %s614 = scalar_lea.sflag [#allocation7], 1
    %615 = vsyncpa %s614, 1

</llo_original>
